<compile_context>
chip_gen: v6e
topology: v6e:2x2x1
jax: 0.10.0
libtpu: 0.0.40
codegen_flags: <defaults>
</compile_context>

<pallas_src>
import jax
import jax.numpy as jnp
from jax import lax
from jax.experimental import pallas as pl
from jax.experimental.pallas import tpu as pltpu


def _sparse_linear_kernel(x_ref, w_ref, m_ref, b_ref, o_ref, acc_ref):
    # Grid = (n_tiles over out_features, k_tiles over in_features); K is last.
    k = pl.program_id(1)

    @pl.when(k == 0)
    def _():
        acc_ref[...] = jnp.zeros_like(acc_ref)

    # Elementwise mask of the weight tile (int8 mask -> f32) on the VPU.
    w_sparse = w_ref[...] * m_ref[...].astype(jnp.float32)      # (tn, tk)

    # x tile (B, tk) contracted against w_sparse (tn, tk) on the minor dim of
    # both operands -> (B, tn). No explicit transpose / XLU pass.
    acc_ref[...] += lax.dot_general(
        x_ref[...], w_sparse,
        dimension_numbers=(((1,), (1,)), ((), ())),
        preferred_element_type=jnp.float32)

    @pl.when(k == pl.num_programs(1) - 1)
    def _():
        # Bias added exactly once; lane-dense store of the (B, tn) tile.
        o_ref[...] = (acc_ref[...] + b_ref[...]).astype(o_ref.dtype)


def _pick_tile(dim, cap=512):
    """Largest tile <= cap that divides `dim`, preferring multiples of 128.

    Falls back to the full extent (always legal for a BlockSpec) if no
    multiple-of-128 divisor exists.
    """
    if dim <= cap:
        return dim
    t = (cap // 128) * 128
    while t >= 128:
        if dim % t == 0:
            return t
        t -= 128
    return dim


def sparse_linear(x, weight, mask, bias):
    """y = x @ (weight * mask).T + bias, as a tiled Pallas TPU kernel.

    x:      (B, in_features)             float32
    weight: (out_features, in_features)  float32
    mask:   (out_features, in_features)  bool / 0-1 values
    bias:   (out_features,)              float32
    """
    B, in_f = x.shape
    out_f, in_f2 = weight.shape
    assert in_f == in_f2

    # Shrink the mask stream: 1 byte/elem instead of 4 (values are 0/1).
    mask_i8 = mask.astype(jnp.int8)
    bias2d = bias.reshape(1, out_f).astype(jnp.float32)

    # Tile caps sized so double-buffered weight+mask+x tiles stay well inside
    # v7x's 64 MiB physical / 32 MiB scoped VMEM (and are comfortable on
    # v5e/v6e's 128 MiB).
    tn = _pick_tile(out_f, cap=512)   # out_features tile (output lane dim)
    tk = _pick_tile(in_f, cap=512)    # in_features (reduction) tile
    n_tiles = out_f // tn
    k_tiles = in_f // tk

    return pl.pallas_call(
        _sparse_linear_kernel,
        out_shape=jax.ShapeDtypeStruct((B, out_f), jnp.float32),
        grid_spec=pltpu.PrefetchScalarGridSpec(
            num_scalar_prefetch=0,
            grid=(n_tiles, k_tiles),                 # reduction axis last
            in_specs=[
                pl.BlockSpec((B, tk), lambda n, k: (0, k)),    # x
                pl.BlockSpec((tn, tk), lambda n, k: (n, k)),   # weight
                pl.BlockSpec((tn, tk), lambda n, k: (n, k)),   # mask (int8)
                pl.BlockSpec((1, tn), lambda n, k: (0, n)),    # bias
            ],
            out_specs=pl.BlockSpec((B, tn), lambda n, k: (0, n)),
            scratch_shapes=[pltpu.VMEM((B, tn), jnp.float32)], # accumulator
        ),
        compiler_params=pltpu.CompilerParams(
            # out_features axis shards across TensorCores (v7x megacore);
            # the K reduction axis must stay sequential.
            dimension_semantics=("parallel", "arbitrary"),
            vmem_limit_bytes=32 * 1024 * 1024,
        ),
    )(x, weight, mask_i8, bias2d)


if __name__ == "__main__":
    # Small MLP-layer-like shapes; big enough that the (out, K) grid actually
    # tiles (grid = (out_f//tn, in_f//tk)).
    batch, in_features, out_features = 8, 256, 256
    sparsity = 0.5

    key = jax.random.PRNGKey(0)
    k_x, k_w, k_b, k_m = jax.random.split(key, 4)

    x = jax.random.normal(k_x, (batch, in_features), dtype=jnp.float32)

    # Deterministic nn.Linear-style init: U(-bound, bound), bound = 1/sqrt(in).
    bound = 1.0 / (in_features ** 0.5)
    weight = jax.random.uniform(k_w, (out_features, in_features),
                                minval=-bound, maxval=bound, dtype=jnp.float32)
    bias = jax.random.uniform(k_b, (out_features,),
                              minval=-bound, maxval=bound, dtype=jnp.float32)

    # mask = (rand(out, in) > sparsity), boolean as in the PyTorch module.
    mask = jax.random.uniform(k_m, (out_features, in_features)) > sparsity

    y = sparse_linear(x, weight, mask, bias)
    y = jax.block_until_ready(y)

    # Reference check against plain JAX (same semantics as F.linear).
    y_ref = x @ (weight * mask.astype(jnp.float32)).T + bias
    assert y.shape == (batch, out_features)
    assert jnp.allclose(y, y_ref, atol=1e-5, rtol=1e-5)

    print("KERNEL_OK")
</pallas_src>

<mosaic_0001>
module attributes {stable_mosaic.version = 11 : i64} {
  func.func @_sparse_linear_kernel(%arg0: i32, %arg1: i32, %arg2: memref<8x256xf32, #tpu.memory_space<vmem>>, %arg3: memref<256x256xf32, #tpu.memory_space<vmem>>, %arg4: memref<256x256xi8, #tpu.memory_space<vmem>>, %arg5: memref<1x256xf32, #tpu.memory_space<vmem>>, %arg6: memref<8x256xf32, #tpu.memory_space<vmem>>, %arg7: memref<8x256xf32, #tpu.memory_space<vmem>>) attributes {dimension_semantics = [#tpu.dimension_semantics<parallel>, #tpu.dimension_semantics<arbitrary>], iteration_bounds = array<i64: 1, 1>, scalar_prefetch = 0 : i64, scratch_operands = 1 : i64, tpu.core_type = #tpu.core_type<tc>, window_params = [{transform_indices = @transform_0, window_bounds = array<i64: 8, 256>}, {transform_indices = @transform_1, window_bounds = array<i64: 256, 256>}, {transform_indices = @transform_2, window_bounds = array<i64: 256, 256>}, {transform_indices = @transform_3, window_bounds = array<i64: 1, 256>}, {transform_indices = @transform_4, window_bounds = array<i64: 8, 256>}]} {
    %c0_i32 = arith.constant 0 : i32
    %0 = arith.cmpi eq, %arg1, %c0_i32 : i32
    %1 = arith.extui %0 : i1 to i32
    %c0_i32_0 = arith.constant 0 : i32
    %2 = arith.cmpi ne, %1, %c0_i32_0 : i32
    scf.if %2 {
      %cst_12 = arith.constant 0.000000e+00 : f32
      %15 = vector.broadcast %cst_12 : f32 to vector<8x256xf32>
      %c0_13 = arith.constant 0 : index
      %c0_14 = arith.constant 0 : index
      %16 = vector.load %arg7[%c0_13, %c0_14] : memref<8x256xf32, #tpu.memory_space<vmem>>, vector<8x256xf32>
      tpu.vector_store %arg7[%c0_13, %c0_14], %15 {strides = array<i32>} : memref<8x256xf32, #tpu.memory_space<vmem>>, vector<8x256xf32>,
    } else {
    }
    %c0 = arith.constant 0 : index
    %c0_1 = arith.constant 0 : index
    %3 = vector.load %arg3[%c0, %c0_1] : memref<256x256xf32, #tpu.memory_space<vmem>>, vector<256x256xf32>
    %c0_2 = arith.constant 0 : index
    %c0_3 = arith.constant 0 : index
    %4 = vector.load %arg4[%c0_2, %c0_3] : memref<256x256xi8, #tpu.memory_space<vmem>>, vector<256x256xi8>
    %5 = arith.sitofp %4 : vector<256x256xi8> to vector<256x256xf32>
    %6 = arith.mulf %3, %5 : vector<256x256xf32>
    %c0_4 = arith.constant 0 : index
    %c0_5 = arith.constant 0 : index
    %7 = vector.load %arg7[%c0_4, %c0_5] : memref<8x256xf32, #tpu.memory_space<vmem>>, vector<8x256xf32>
    %c0_6 = arith.constant 0 : index
    %c0_7 = arith.constant 0 : index
    %8 = vector.load %arg2[%c0_6, %c0_7] : memref<8x256xf32, #tpu.memory_space<vmem>>, vector<8x256xf32>
    %cst = arith.constant dense<0.000000e+00> : vector<8x256xf32>
    %9 = tpu.matmul %8, %6, %cst {dimension_numbers = #tpu.dot_dimension_numbers<[1], [1], [0], [0], [0, 0, 1, 0], [], []>} : vector<8x256xf32>, vector<256x256xf32>, vector<8x256xf32> -> vector<8x256xf32>
    %10 = arith.addf %7, %9 : vector<8x256xf32>
    %c0_8 = arith.constant 0 : index
    %c0_9 = arith.constant 0 : index
    %11 = vector.load %arg7[%c0_8, %c0_9] : memref<8x256xf32, #tpu.memory_space<vmem>>, vector<8x256xf32>
    tpu.vector_store %arg7[%c0_8, %c0_9], %10 {strides = array<i32>} : memref<8x256xf32, #tpu.memory_space<vmem>>, vector<8x256xf32>,
    %c0_i32_10 = arith.constant 0 : i32
    %12 = arith.cmpi eq, %arg1, %c0_i32_10 : i32
    %13 = arith.extui %12 : i1 to i32
    %c0_i32_11 = arith.constant 0 : i32
    %14 = arith.cmpi ne, %13, %c0_i32_11 : i32
    scf.if %14 {
      %c0_12 = arith.constant 0 : index
      %c0_13 = arith.constant 0 : index
      %15 = vector.load %arg7[%c0_12, %c0_13] : memref<8x256xf32, #tpu.memory_space<vmem>>, vector<8x256xf32>
      %c0_14 = arith.constant 0 : index
      %c0_15 = arith.constant 0 : index
      %16 = vector.load %arg5[%c0_14, %c0_15] : memref<1x256xf32, #tpu.memory_space<vmem>>, vector<1x256xf32>
      %17 = vector.broadcast %16 : vector<1x256xf32> to vector<8x256xf32>
      %18 = arith.addf %15, %17 : vector<8x256xf32>
      %c0_16 = arith.constant 0 : index
      %c0_17 = arith.constant 0 : index
      %19 = vector.load %arg6[%c0_16, %c0_17] : memref<8x256xf32, #tpu.memory_space<vmem>>, vector<8x256xf32>
      tpu.vector_store %arg6[%c0_16, %c0_17], %18 {strides = array<i32>} : memref<8x256xf32, #tpu.memory_space<vmem>>, vector<8x256xf32>,
    } else {
    }
    return
  }
  func.func @transform_0(%arg0: i32, %arg1: i32) -> (i32, i32) {
    %c0_i32 = arith.constant 0 : i32
    %c0_i32_0 = arith.constant 0 : i32
    return %c0_i32, %arg1 : i32, i32
  }
  func.func @transform_1(%arg0: i32, %arg1: i32) -> (i32, i32) {
    %c0_i32 = arith.constant 0 : i32
    return %arg0, %arg1 : i32, i32
  }
  func.func @transform_2(%arg0: i32, %arg1: i32) -> (i32, i32) {
    %c0_i32 = arith.constant 0 : i32
    return %arg0, %arg1 : i32, i32
  }
  func.func @transform_3(%arg0: i32, %arg1: i32) -> (i32, i32) {
    %c0_i32 = arith.constant 0 : i32
    %c0_i32_0 = arith.constant 0 : i32
    return %c0_i32, %arg0 : i32, i32
  }
  func.func @transform_4(%arg0: i32, %arg1: i32) -> (i32, i32) {
    %c0_i32 = arith.constant 0 : i32
    %c0_i32_0 = arith.constant 0 : i32
    return %c0_i32, %arg0 : i32, i32
  }
}

</mosaic_0001>

<llo_original>
// kernel: tpu_custom_call.1
$region0: #{tpu_custom_call.1}
  #allocation0 [shape = 'u32[]', space=smem, size = 0x4, offset = 0x4, fixed_abs, tag = 'smem constant byte address 0x4 - core index']
  #allocation1 [shape = 'u32[144,128]{1,0:T(1,128)}', space=vmem, size = 0x12000, scoped, tag = 'internal scratch']
  #allocation2 [shape = 'f32[8,256]{1,0:T(8,128)}', space=vmem, size = 0x2000, scoped, tag = 'scratch operand']
  %s0 = inlined_call_operand.hbm [shape: f32[8,256], index: 0, kind: input, shape index: {}]
  %s1 = inlined_call_operand.hbm [shape: f32[256,256], index: 1, kind: input, shape index: {}]
  %s2 = inlined_call_operand.hbm [shape: s8[256,256], index: 2, kind: input, shape index: {}]
  %s3 = inlined_call_operand.vmem [shape: f32[1,256], index: 3, kind: input, shape index: {}]
  %s4 = inlined_call_operand.hbm [shape: f32[8,256], index: 4, kind: output, shape index: {}]
  %s5 = sld [smem:[#allocation0]]
  $region46: #{tpu_custom_call.1} parent=0
    _
  %s7 = ssub.s32 1, %s5
  %s8 = scalar_select 0, %s7, %s5
  $region1: #{tpu_custom_call.1} parent=0
    #allocation3 [shape = 'u8[8192]{0}', space=vmem, size = 0x2000, scoped, tag = 'input window, operand 0, single buffered']
    #allocation4 [shape = 's32[1]{0}', space=sflag, size = 0x4, scoped, tag = 'scoped memory for tpu_custom_call.1']
    #allocation5 [shape = 's32[1]{0}', space=sflag, size = 0x4, scoped, tag = 'scoped memory for tpu_custom_call.1']
    #allocation6 [shape = 'u8[262144]{0}', space=vmem, size = 0x40000, scoped, tag = 'input window, operand 1, single buffered']
    #allocation7 [shape = 's32[1]{0}', space=sflag, size = 0x4, scoped, tag = 'scoped memory for tpu_custom_call.1']
    #allocation8 [shape = 'u8[65536]{0}', space=vmem, size = 0x10000, scoped, tag = 'input window, operand 2, single buffered']
    #allocation9 [shape = 'u8[8192]{0}', space=vmem, size = 0x2000, scoped, tag = 'output window, operand 0, single buffered']
    %9 = vsyncpa [#allocation4], 0
    %10 = vsyncpa [#allocation7], 0
    %11 = vsyncpa [#allocation5], 0
    // Predicated region
    $region2: #{tpu_custom_call.1} parent=1 // pred_check
      _
    $region3: #{tpu_custom_call.1} parent=1 // pred_check_branch
      %13 = sbr.rel (0) target = $region5
    $region4: #{tpu_custom_call.1} parent=1 // pred_region
      %s15 = ssub.s32 256, 256
      %16 = vsyncadd [#allocation4], %s15
      %s18 = sshll.u32 [#allocation3], 4
      %s19 = int_to_ptr.vmem [resolvable:$true] %s18
      %21 = dma.hbm_to_vmem [thread:$0]  %s0, 256, %s19, [#allocation4]
    $region5: #{tpu_custom_call.1} parent=1 // pred_fallthru
      _
    // Predicated region
    $region6: #{tpu_custom_call.1} parent=1 // pred_check
      _
    $region7: #{tpu_custom_call.1} parent=1 // pred_check_branch
      %23 = sbr.rel (0) target = $region9
    $region8: #{tpu_custom_call.1} parent=1 // pred_region
      %s25 = ssub.s32 8192, 8192
      %26 = vsyncadd [#allocation7], %s25
      %s27 = sshll.u32 [#allocation6], 4
      %s28 = int_to_ptr.vmem [resolvable:$true] %s27
      %33 = dma.hbm_to_vmem [thread:$0]  %s1, 8192, %s28, [#allocation7], 256, 256, 16
    $region9: #{tpu_custom_call.1} parent=1 // pred_fallthru
      _
    // Predicated region
    $region10: #{tpu_custom_call.1} parent=1 // pred_check
      _
    $region11: #{tpu_custom_call.1} parent=1 // pred_check_branch
      %35 = sbr.rel (0) target = $region13
    $region12: #{tpu_custom_call.1} parent=1 // pred_region
      %s37 = ssub.s32 2048, 2048
      %38 = vsyncadd [#allocation7], %s37
      %s39 = sshll.u32 [#allocation8], 4
      %s40 = int_to_ptr.vmem [resolvable:$true] %s39
      %45 = dma.hbm_to_vmem [thread:$0]  %s2, 2048, %s40, [#allocation7], 256, 256, 16
    $region13: #{tpu_custom_call.1} parent=1 // pred_fallthru
      _
    // Predicated region
    $region14: #{tpu_custom_call.1} parent=1 // pred_check
      _
    $region15: #{tpu_custom_call.1} parent=1 // pred_check_branch
      %47 = sbr.rel (0) target = $region17
    $region16: #{tpu_custom_call.1} parent=1 // pred_region
      _
    $region17: #{tpu_custom_call.1} parent=1 // pred_fallthru
      _
    // Predicated region
    $region18: #{tpu_custom_call.1} parent=1 // pred_check
      _
    $region19: #{tpu_custom_call.1} parent=1 // pred_check_branch
      %49 = sbr.rel (0) target = $region21
    $region20: #{tpu_custom_call.1} parent=1 // pred_region
      %50 = dma.done [#allocation4], 256
    $region21: #{tpu_custom_call.1} parent=1 // pred_fallthru
      _
    // Predicated region
    $region22: #{tpu_custom_call.1} parent=1 // pred_check
      _
    $region23: #{tpu_custom_call.1} parent=1 // pred_check_branch
      %52 = sbr.rel (0) target = $region25
    $region24: #{tpu_custom_call.1} parent=1 // pred_region
      %53 = dma.done [#allocation7], 8192
    $region25: #{tpu_custom_call.1} parent=1 // pred_fallthru
      _
    // Predicated region
    $region26: #{tpu_custom_call.1} parent=1 // pred_check
      _
    $region27: #{tpu_custom_call.1} parent=1 // pred_check_branch
      %55 = sbr.rel (0) target = $region29
    $region28: #{tpu_custom_call.1} parent=1 // pred_region
      %56 = dma.done [#allocation7], 2048
    $region29: #{tpu_custom_call.1} parent=1 // pred_fallthru
      _
    %p57 = scmp.eq.s32.totalorder 0, 0
    // Predicated region
    $region30: #{tpu_custom_call.1} parent=1 // pred_check
      %p58 = pneg %p57
    $region31: #{tpu_custom_call.1} parent=1 // pred_check_branch
      %60 = sbr.rel (%p58) target = $region33
    $region32: #{tpu_custom_call.1} parent=1 // pred_region
      %61 = vst [vmem:[#allocation2] sm:$0xff] 0.0
      %62 = vst [vmem:[#allocation2 + $0x8] sm:$0xff] 0.0
    $region33: #{tpu_custom_call.1} parent=1 // pred_fallthru
      _
    %v63 = vld [vmem:[#allocation6] sm:$0xff]
    %v64 = vld [vmem:[#allocation6 + $0x8] sm:$0xff]
    %v65 = vld [vmem:[#allocation6 + $0x10] sm:$0xff]
    %v66 = vld [vmem:[#allocation6 + $0x18] sm:$0xff]
    %v67 = vld [vmem:[#allocation6 + $0x20] sm:$0xff]
    %v68 = vld [vmem:[#allocation6 + $0x28] sm:$0xff]
    %v69 = vld [vmem:[#allocation6 + $0x30] sm:$0xff]
    %v70 = vld [vmem:[#allocation6 + $0x38] sm:$0xff]
    %v71 = vld [vmem:[#allocation6 + $0x40] sm:$0xff]
    %v72 = vld [vmem:[#allocation6 + $0x48] sm:$0xff]
    %v73 = vld [vmem:[#allocation6 + $0x50] sm:$0xff]
    %v74 = vld [vmem:[#allocation6 + $0x58] sm:$0xff]
    %v75 = vld [vmem:[#allocation6 + $0x60] sm:$0xff]
    %v76 = vld [vmem:[#allocation6 + $0x68] sm:$0xff]
    %v77 = vld [vmem:[#allocation6 + $0x70] sm:$0xff]
    %v78 = vld [vmem:[#allocation6 + $0x78] sm:$0xff]
    %v79 = vld [vmem:[#allocation6 + $0x80] sm:$0xff]
    %v80 = vld [vmem:[#allocation6 + $0x88] sm:$0xff]
    %v81 = vld [vmem:[#allocation6 + $0x90] sm:$0xff]
    %v82 = vld [vmem:[#allocation6 + $0x98] sm:$0xff]
    %v83 = vld [vmem:[#allocation6 + $0xa0] sm:$0xff]
    %v84 = vld [vmem:[#allocation6 + $0xa8] sm:$0xff]
    %v85 = vld [vmem:[#allocation6 + $0xb0] sm:$0xff]
    %v86 = vld [vmem:[#allocation6 + $0xb8] sm:$0xff]
    %v87 = vld [vmem:[#allocation6 + $0xc0] sm:$0xff]
    %v88 = vld [vmem:[#allocation6 + $0xc8] sm:$0xff]
    %v89 = vld [vmem:[#allocation6 + $0xd0] sm:$0xff]
    %v90 = vld [vmem:[#allocation6 + $0xd8] sm:$0xff]
    %v91 = vld [vmem:[#allocation6 + $0xe0] sm:$0xff]
    %v92 = vld [vmem:[#allocation6 + $0xe8] sm:$0xff]
    %v93 = vld [vmem:[#allocation6 + $0xf0] sm:$0xff]
    %v94 = vld [vmem:[#allocation6 + $0xf8] sm:$0xff]
    %v95 = vld [vmem:[#allocation6 + $0x100] sm:$0xff]
    %v96 = vld [vmem:[#allocation6 + $0x108] sm:$0xff]
    %v97 = vld [vmem:[#allocation6 + $0x110] sm:$0xff]
    %v98 = vld [vmem:[#allocation6 + $0x118] sm:$0xff]
    %v99 = vld [vmem:[#allocation6 + $0x120] sm:$0xff]
    %v100 = vld [vmem:[#allocation6 + $0x128] sm:$0xff]
    %v101 = vld [vmem:[#allocation6 + $0x130] sm:$0xff]
    %v102 = vld [vmem:[#allocation6 + $0x138] sm:$0xff]
    %v103 = vld [vmem:[#allocation6 + $0x140] sm:$0xff]
    %v104 = vld [vmem:[#allocation6 + $0x148] sm:$0xff]
    %v105 = vld [vmem:[#allocation6 + $0x150] sm:$0xff]
    %v106 = vld [vmem:[#allocation6 + $0x158] sm:$0xff]
    %v107 = vld [vmem:[#allocation6 + $0x160] sm:$0xff]
    %v108 = vld [vmem:[#allocation6 + $0x168] sm:$0xff]
    %v109 = vld [vmem:[#allocation6 + $0x170] sm:$0xff]
    %v110 = vld [vmem:[#allocation6 + $0x178] sm:$0xff]
    %v111 = vld [vmem:[#allocation6 + $0x180] sm:$0xff]
    %v112 = vld [vmem:[#allocation6 + $0x188] sm:$0xff]
    %v113 = vld [vmem:[#allocation6 + $0x190] sm:$0xff]
    %v114 = vld [vmem:[#allocation6 + $0x198] sm:$0xff]
    %v115 = vld [vmem:[#allocation6 + $0x1a0] sm:$0xff]
    %v116 = vld [vmem:[#allocation6 + $0x1a8] sm:$0xff]
    %v117 = vld [vmem:[#allocation6 + $0x1b0] sm:$0xff]
    %v118 = vld [vmem:[#allocation6 + $0x1b8] sm:$0xff]
    %v119 = vld [vmem:[#allocation6 + $0x1c0] sm:$0xff]
    %v120 = vld [vmem:[#allocation6 + $0x1c8] sm:$0xff]
    %v121 = vld [vmem:[#allocation6 + $0x1d0] sm:$0xff]
    %v122 = vld [vmem:[#allocation6 + $0x1d8] sm:$0xff]
    %v123 = vld [vmem:[#allocation6 + $0x1e0] sm:$0xff]
    %v124 = vld [vmem:[#allocation6 + $0x1e8] sm:$0xff]
    %v125 = vld [vmem:[#allocation6 + $0x1f0] sm:$0xff]
    %v126 = vld [vmem:[#allocation6 + $0x1f8] sm:$0xff]
    %v127 = vld [vmem:[#allocation8] sm:$0xff]
    %v128 = vld [vmem:[#allocation8 + $0x8] sm:$0xff]
    %v129 = vld [vmem:[#allocation8 + $0x10] sm:$0xff]
    %v130 = vld [vmem:[#allocation8 + $0x18] sm:$0xff]
    %v131 = vld [vmem:[#allocation8 + $0x20] sm:$0xff]
    %v132 = vld [vmem:[#allocation8 + $0x28] sm:$0xff]
    %v133 = vld [vmem:[#allocation8 + $0x30] sm:$0xff]
    %v134 = vld [vmem:[#allocation8 + $0x38] sm:$0xff]
    %v135 = vld [vmem:[#allocation8 + $0x40] sm:$0xff]
    %v136 = vld [vmem:[#allocation8 + $0x48] sm:$0xff]
    %v137 = vld [vmem:[#allocation8 + $0x50] sm:$0xff]
    %v138 = vld [vmem:[#allocation8 + $0x58] sm:$0xff]
    %v139 = vld [vmem:[#allocation8 + $0x60] sm:$0xff]
    %v140 = vld [vmem:[#allocation8 + $0x68] sm:$0xff]
    %v141 = vld [vmem:[#allocation8 + $0x70] sm:$0xff]
    %v142 = vld [vmem:[#allocation8 + $0x78] sm:$0xff]
    %v143 = vunpack.c.0.s8 %v127
    %v144 = vunpack.c.0.s8 %v128
    %v145 = vunpack.c.1.s8 %v127
    %v146 = vunpack.c.1.s8 %v128
    %v147 = vunpack.c.2.s8 %v127
    %v148 = vunpack.c.2.s8 %v128
    %v149 = vunpack.c.3.s8 %v127
    %v150 = vunpack.c.3.s8 %v128
    %v151 = vunpack.c.0.s8 %v129
    %v152 = vunpack.c.0.s8 %v130
    %v153 = vunpack.c.1.s8 %v129
    %v154 = vunpack.c.1.s8 %v130
    %v155 = vunpack.c.2.s8 %v129
    %v156 = vunpack.c.2.s8 %v130
    %v157 = vunpack.c.3.s8 %v129
    %v158 = vunpack.c.3.s8 %v130
    %v159 = vunpack.c.0.s8 %v131
    %v160 = vunpack.c.0.s8 %v132
    %v161 = vunpack.c.1.s8 %v131
    %v162 = vunpack.c.1.s8 %v132
    %v163 = vunpack.c.2.s8 %v131
    %v164 = vunpack.c.2.s8 %v132
    %v165 = vunpack.c.3.s8 %v131
    %v166 = vunpack.c.3.s8 %v132
    %v167 = vunpack.c.0.s8 %v133
    %v168 = vunpack.c.0.s8 %v134
    %v169 = vunpack.c.1.s8 %v133
    %v170 = vunpack.c.1.s8 %v134
    %v171 = vunpack.c.2.s8 %v133
    %v172 = vunpack.c.2.s8 %v134
    %v173 = vunpack.c.3.s8 %v133
    %v174 = vunpack.c.3.s8 %v134
    %v175 = vunpack.c.0.s8 %v135
    %v176 = vunpack.c.0.s8 %v136
    %v177 = vunpack.c.1.s8 %v135
    %v178 = vunpack.c.1.s8 %v136
    %v179 = vunpack.c.2.s8 %v135
    %v180 = vunpack.c.2.s8 %v136
    %v181 = vunpack.c.3.s8 %v135
    %v182 = vunpack.c.3.s8 %v136
    %v183 = vunpack.c.0.s8 %v137
    %v184 = vunpack.c.0.s8 %v138
    %v185 = vunpack.c.1.s8 %v137
    %v186 = vunpack.c.1.s8 %v138
    %v187 = vunpack.c.2.s8 %v137
    %v188 = vunpack.c.2.s8 %v138
    %v189 = vunpack.c.3.s8 %v137
    %v190 = vunpack.c.3.s8 %v138
    %v191 = vunpack.c.0.s8 %v139
    %v192 = vunpack.c.0.s8 %v140
    %v193 = vunpack.c.1.s8 %v139
    %v194 = vunpack.c.1.s8 %v140
    %v195 = vunpack.c.2.s8 %v139
    %v196 = vunpack.c.2.s8 %v140
    %v197 = vunpack.c.3.s8 %v139
    %v198 = vunpack.c.3.s8 %v140
    %v199 = vunpack.c.0.s8 %v141
    %v200 = vunpack.c.0.s8 %v142
    %v201 = vunpack.c.1.s8 %v141
    %v202 = vunpack.c.1.s8 %v142
    %v203 = vunpack.c.2.s8 %v141
    %v204 = vunpack.c.2.s8 %v142
    %v205 = vunpack.c.3.s8 %v141
    %v206 = vunpack.c.3.s8 %v142
    %v207 = vcvt.s32.f32 %v143
    %v208 = vcvt.s32.f32 %v144
    %v209 = vcvt.s32.f32 %v145
    %v210 = vcvt.s32.f32 %v146
    %v211 = vcvt.s32.f32 %v147
    %v212 = vcvt.s32.f32 %v148
    %v213 = vcvt.s32.f32 %v149
    %v214 = vcvt.s32.f32 %v150
    %v215 = vcvt.s32.f32 %v151
    %v216 = vcvt.s32.f32 %v152
    %v217 = vcvt.s32.f32 %v153
    %v218 = vcvt.s32.f32 %v154
    %v219 = vcvt.s32.f32 %v155
    %v220 = vcvt.s32.f32 %v156
    %v221 = vcvt.s32.f32 %v157
    %v222 = vcvt.s32.f32 %v158
    %v223 = vcvt.s32.f32 %v159
    %v224 = vcvt.s32.f32 %v160
    %v225 = vcvt.s32.f32 %v161
    %v226 = vcvt.s32.f32 %v162
    %v227 = vcvt.s32.f32 %v163
    %v228 = vcvt.s32.f32 %v164
    %v229 = vcvt.s32.f32 %v165
    %v230 = vcvt.s32.f32 %v166
    %v231 = vcvt.s32.f32 %v167
    %v232 = vcvt.s32.f32 %v168
    %v233 = vcvt.s32.f32 %v169
    %v234 = vcvt.s32.f32 %v170
    %v235 = vcvt.s32.f32 %v171
    %v236 = vcvt.s32.f32 %v172
    %v237 = vcvt.s32.f32 %v173
    %v238 = vcvt.s32.f32 %v174
    %v239 = vcvt.s32.f32 %v175
    %v240 = vcvt.s32.f32 %v176
    %v241 = vcvt.s32.f32 %v177
    %v242 = vcvt.s32.f32 %v178
    %v243 = vcvt.s32.f32 %v179
    %v244 = vcvt.s32.f32 %v180
    %v245 = vcvt.s32.f32 %v181
    %v246 = vcvt.s32.f32 %v182
    %v247 = vcvt.s32.f32 %v183
    %v248 = vcvt.s32.f32 %v184
    %v249 = vcvt.s32.f32 %v185
    %v250 = vcvt.s32.f32 %v186
    %v251 = vcvt.s32.f32 %v187
    %v252 = vcvt.s32.f32 %v188
    %v253 = vcvt.s32.f32 %v189
    %v254 = vcvt.s32.f32 %v190
    %v255 = vcvt.s32.f32 %v191
    %v256 = vcvt.s32.f32 %v192
    %v257 = vcvt.s32.f32 %v193
    %v258 = vcvt.s32.f32 %v194
    %v259 = vcvt.s32.f32 %v195
    %v260 = vcvt.s32.f32 %v196
    %v261 = vcvt.s32.f32 %v197
    %v262 = vcvt.s32.f32 %v198
    %v263 = vcvt.s32.f32 %v199
    %v264 = vcvt.s32.f32 %v200
    %v265 = vcvt.s32.f32 %v201
    %v266 = vcvt.s32.f32 %v202
    %v267 = vcvt.s32.f32 %v203
    %v268 = vcvt.s32.f32 %v204
    %v269 = vcvt.s32.f32 %v205
    %v270 = vcvt.s32.f32 %v206
    %v271 = vmul.f32 %v63, %v207
    %v272 = vmul.f32 %v64, %v208
    %v273 = vmul.f32 %v65, %v209
    %v274 = vmul.f32 %v66, %v210
    %v275 = vmul.f32 %v67, %v211
    %v276 = vmul.f32 %v68, %v212
    %v277 = vmul.f32 %v69, %v213
    %v278 = vmul.f32 %v70, %v214
    %v279 = vmul.f32 %v71, %v215
    %v280 = vmul.f32 %v72, %v216
    %v281 = vmul.f32 %v73, %v217
    %v282 = vmul.f32 %v74, %v218
    %v283 = vmul.f32 %v75, %v219
    %v284 = vmul.f32 %v76, %v220
    %v285 = vmul.f32 %v77, %v221
    %v286 = vmul.f32 %v78, %v222
    %v287 = vmul.f32 %v79, %v223
    %v288 = vmul.f32 %v80, %v224
    %v289 = vmul.f32 %v81, %v225
    %v290 = vmul.f32 %v82, %v226
    %v291 = vmul.f32 %v83, %v227
    %v292 = vmul.f32 %v84, %v228
    %v293 = vmul.f32 %v85, %v229
    %v294 = vmul.f32 %v86, %v230
    %v295 = vmul.f32 %v87, %v231
    %v296 = vmul.f32 %v88, %v232
    %v297 = vmul.f32 %v89, %v233
    %v298 = vmul.f32 %v90, %v234
    %v299 = vmul.f32 %v91, %v235
    %v300 = vmul.f32 %v92, %v236
    %v301 = vmul.f32 %v93, %v237
    %v302 = vmul.f32 %v94, %v238
    %v303 = vmul.f32 %v95, %v239
    %v304 = vmul.f32 %v96, %v240
    %v305 = vmul.f32 %v97, %v241
    %v306 = vmul.f32 %v98, %v242
    %v307 = vmul.f32 %v99, %v243
    %v308 = vmul.f32 %v100, %v244
    %v309 = vmul.f32 %v101, %v245
    %v310 = vmul.f32 %v102, %v246
    %v311 = vmul.f32 %v103, %v247
    %v312 = vmul.f32 %v104, %v248
    %v313 = vmul.f32 %v105, %v249
    %v314 = vmul.f32 %v106, %v250
    %v315 = vmul.f32 %v107, %v251
    %v316 = vmul.f32 %v108, %v252
    %v317 = vmul.f32 %v109, %v253
    %v318 = vmul.f32 %v110, %v254
    %v319 = vmul.f32 %v111, %v255
    %v320 = vmul.f32 %v112, %v256
    %v321 = vmul.f32 %v113, %v257
    %v322 = vmul.f32 %v114, %v258
    %v323 = vmul.f32 %v115, %v259
    %v324 = vmul.f32 %v116, %v260
    %v325 = vmul.f32 %v117, %v261
    %v326 = vmul.f32 %v118, %v262
    %v327 = vmul.f32 %v119, %v263
    %v328 = vmul.f32 %v120, %v264
    %v329 = vmul.f32 %v121, %v265
    %v330 = vmul.f32 %v122, %v266
    %v331 = vmul.f32 %v123, %v267
    %v332 = vmul.f32 %v124, %v268
    %v333 = vmul.f32 %v125, %v269
    %v334 = vmul.f32 %v126, %v270
    %v335 = vld [vmem:[#allocation2] sm:$0xff]
    %v336 = vld [vmem:[#allocation2 + $0x8] sm:$0xff]
    %v337 = vld [vmem:[#allocation3] sm:$0xff]
    %v338 = vld [vmem:[#allocation3 + $0x8] sm:$0xff]
    %339 = vmatprep.subr.mxu0 %v302
    %340 = vmatpush1.xpose.msra.mxu0 %v301
    %341 = vmatprep.subr.mxu0 %v300
    %342 = vmatpush1.xpose.msra.mxu0 %v299
    %343 = vmatprep.subr.mxu0 %v298
    %344 = vmatpush1.xpose.msra.mxu0 %v297
    %345 = vmatprep.subr.mxu0 %v296
    %346 = vmatpush1.xpose.msra.mxu0 %v295
    %347 = vmatprep.subr.mxu0 %v294
    %348 = vmatpush1.xpose.msra.mxu0 %v293
    %349 = vmatprep.subr.mxu0 %v292
    %350 = vmatpush1.xpose.msra.mxu0 %v291
    %351 = vmatprep.subr.mxu0 %v290
    %352 = vmatpush1.xpose.msra.mxu0 %v289
    %353 = vmatprep.subr.mxu0 %v288
    %354 = vmatpush1.xpose.msra.mxu0 %v287
    %355 = vmatprep.subr.mxu0 %v286
    %356 = vmatpush1.xpose.msra.mxu0 %v285
    %357 = vmatprep.subr.mxu0 %v284
    %358 = vmatpush1.xpose.msra.mxu0 %v283
    %359 = vmatprep.subr.mxu0 %v282
    %360 = vmatpush1.xpose.msra.mxu0 %v281
    %361 = vmatprep.subr.mxu0 %v280
    %362 = vmatpush1.xpose.msra.mxu0 %v279
    %363 = vmatprep.subr.mxu0 %v278
    %364 = vmatpush1.xpose.msra.mxu0 %v277
    %365 = vmatprep.subr.mxu0 %v276
    %366 = vmatpush1.xpose.msra.mxu0 %v275
    %367 = vmatprep.subr.mxu0 %v274
    %368 = vmatpush1.xpose.msra.mxu0 %v273
    %369 = vmatprep.subr.mxu0 %v272
    %370 = vmatpush1.xpose.msra.mxu0 %v271
    %371 = vmatprep.subr.mxu0 %v334
    %372 = vmatpush2.xpose.msra.mxu0 %v333
    %373 = vmatprep.subr.mxu0 %v332
    %374 = vmatpush2.xpose.msra.mxu0 %v331
    %375 = vmatprep.subr.mxu0 %v330
    %376 = vmatpush2.xpose.msra.mxu0 %v329
    %377 = vmatprep.subr.mxu0 %v328
    %378 = vmatpush2.xpose.msra.mxu0 %v327
    %379 = vmatprep.subr.mxu0 %v326
    %380 = vmatpush2.xpose.msra.mxu0 %v325
    %381 = vmatprep.subr.mxu0 %v324
    %382 = vmatpush2.xpose.msra.mxu0 %v323
    %383 = vmatprep.subr.mxu0 %v322
    %384 = vmatpush2.xpose.msra.mxu0 %v321
    %385 = vmatprep.subr.mxu0 %v320
    %386 = vmatpush2.xpose.msra.mxu0 %v319
    %387 = vmatprep.subr.mxu0 %v318
    %388 = vmatpush2.xpose.msra.mxu0 %v317
    %389 = vmatprep.subr.mxu0 %v316
    %390 = vmatpush2.xpose.msra.mxu0 %v315
    %391 = vmatprep.subr.mxu0 %v314
    %392 = vmatpush2.xpose.msra.mxu0 %v313
    %393 = vmatprep.subr.mxu0 %v312
    %394 = vmatpush2.xpose.msra.mxu0 %v311
    %395 = vmatprep.subr.mxu0 %v310
    %396 = vmatpush2.xpose.msra.mxu0 %v309
    %397 = vmatprep.subr.mxu0 %v308
    %398 = vmatpush2.xpose.msra.mxu0 %v307
    %399 = vmatprep.subr.mxu0 %v306
    %400 = vmatpush2.xpose.msra.mxu0 %v305
    %401 = vmatprep.subr.mxu0 %v304
    %402 = vmatpush2.xpose.msra.mxu0 %v303
    %403 = vmatprep.mubr.f32.mxu0 %v338
    %404 = vmatmul.mubr.f32.gmra.mxu0 %v337
    %v405 = vpop.f32.mrf.mxu0
    %v406 = vadd.f32 0.0, %v405
    %v407 = vpop.f32.mrf.mxu0
    %v408 = vadd.f32 0.0, %v407
    %409 = vdwg.mxu0
    %v410 = vadd.f32 %v335, %v406
    %v411 = vadd.f32 %v336, %v408
    %412 = vst [vmem:[#allocation2] sm:$0xff] %v410
    %413 = vst [vmem:[#allocation2 + $0x8] sm:$0xff] %v411
    // Predicated region
    $region34: #{tpu_custom_call.1} parent=1 // pred_check
      %p414 = pneg %p57
    $region35: #{tpu_custom_call.1} parent=1 // pred_check_branch
      %416 = sbr.rel (%p414) target = $region37
    $region36: #{tpu_custom_call.1} parent=1 // pred_region
      %v417 = vld [vmem:[#allocation2] sm:$0xff]
      %v418 = vld [vmem:[#allocation2 + $0x8] sm:$0xff]
      %v419 = vld [vmem:[%s3] sm:$0x3]
      %v421 = vlaneseq
      %v422 = vshrl.u32 %v421, 7
      %v423 = vsub.s32 0, %v422
      %v424 = vrot.slane %v419, %v423
      %v425 = vlaneseq
      %v426 = vshrl.u32 %v425, 7
      %v427 = vsub.s32 1, %v426
      %v428 = vrot.slane %v419, %v427
      %v431 = vadd.f32 %v417, %v424
      %v432 = vadd.f32 %v418, %v428
      %433 = vst [vmem:[#allocation9] sm:$0xff] %v431
      %434 = vst [vmem:[#allocation9 + $0x8] sm:$0xff] %v432
    $region37: #{tpu_custom_call.1} parent=1 // pred_fallthru
      _
    // Predicated region
    $region38: #{tpu_custom_call.1} parent=1 // pred_check
      _
    $region39: #{tpu_custom_call.1} parent=1 // pred_check_branch
      %436 = sbr.rel (0) target = $region41
    $region40: #{tpu_custom_call.1} parent=1 // pred_region
      %s438 = ssub.s32 256, 256
      %439 = vsyncadd [#allocation5], %s438
      %s441 = sshll.u32 [#allocation9], 4
      %s442 = int_to_ptr.vmem [resolvable:$true] %s441
      %444 = dma.vmem_to_hbm [thread:$0]  %s442, 256, %s4, [#allocation5]
    $region41: #{tpu_custom_call.1} parent=1 // pred_fallthru
      _
    // Predicated region
    $region42: #{tpu_custom_call.1} parent=1 // pred_check
      _
    $region43: #{tpu_custom_call.1} parent=1 // pred_check_branch
      %446 = sbr.rel (0) target = $region45
    $region44: #{tpu_custom_call.1} parent=1 // pred_region
      %447 = dma.done [#allocation5], 256
    $region45: #{tpu_custom_call.1} parent=1 // pred_fallthru
      _
    %448 = vsyncpa [#allocation4], 1
    %449 = vsyncpa [#allocation7], 1
    %450 = vsyncpa [#allocation5], 1

</llo_original>
